<compile_context>
chip_gen: v5e
topology: v5e:2x2
jax: 0.10.0
libtpu: 0.0.40
codegen_flags: <defaults>
</compile_context>

<pallas_src>
import functools

import jax
import jax.numpy as jnp
from jax import lax
from jax.experimental import pallas as pl
from jax.experimental.pallas import tpu as pltpu


# ---------------------------------------------------------------------------
# Stage 1: 1x1-conv Q/K/V projections (hoisted out of the flash loop).
# ---------------------------------------------------------------------------
def _proj_kernel(x_ref, wq_ref, wk_ref, wv_ref, bq_ref, bk_ref, bv_ref,
                 q_ref, k_ref, v_ref):
    """One (batch, pixel-tile) block of the 1x1-conv projections.

    x_ref : (C, T)  bf16 channel-major pixels
    w*_ref: (Co, C) bf16 projection weights
    b*_ref: (Co, 1) f32  biases (added post-matmul in f32)
    q/k/v : (Co, T) bf16 outputs
    """
    x = x_ref[...]
    q_ref[...] = (jnp.dot(wq_ref[...], x, preferred_element_type=jnp.float32)
                  + bq_ref[...]).astype(q_ref.dtype)
    k_ref[...] = (jnp.dot(wk_ref[...], x, preferred_element_type=jnp.float32)
                  + bk_ref[...]).astype(k_ref.dtype)
    v_ref[...] = (jnp.dot(wv_ref[...], x, preferred_element_type=jnp.float32)
                  + bv_ref[...]).astype(v_ref.dtype)


# ---------------------------------------------------------------------------
# Stage 2: flash-style (online-softmax) attention over precomputed bf16 Q/K/V.
# ---------------------------------------------------------------------------
def _flash_kernel(q_ref, k_ref, v_ref, xres_ref, o_ref, m_sc, l_sc, acc_sc):
    """One (batch, q-tile, kv-tile) grid step.

    q_ref   : (C8, TQ) bf16  query tile (resident across the kv axis)
    k_ref   : (C8, TK) bf16  key tile (streamed)
    v_ref   : (C,  TK) bf16  value tile (streamed)
    xres_ref: (C,  TQ) f32   residual tile (resident, read on the last kv step)
    o_ref   : (C,  TQ) f32   output tile (written on the last kv step)
    m_sc/l_sc: (1, TQ) f32   running max / running sum
    acc_sc  : (C,  TQ) f32   running PV accumulator
    """
    ki = pl.program_id(2)

    @pl.when(ki == 0)
    def _init():
        m_sc[...] = jnp.full(m_sc.shape, -jnp.inf, dtype=m_sc.dtype)
        l_sc[...] = jnp.zeros(l_sc.shape, dtype=l_sc.dtype)
        acc_sc[...] = jnp.zeros(acc_sc.shape, dtype=acc_sc.dtype)

    # Scores with keys on the sublane axis: s[j, i] = <k_j, q_i>.  The channel
    # axis is contracted directly (no wrapper-side transposes); at small C8 the
    # MXU is mostly idle here and the kernel is exp/VPU-bound — expected.
    s = lax.dot_general(
        k_ref[...], q_ref[...],
        dimension_numbers=(((0,), (0,)), ((), ())),
        preferred_element_type=jnp.float32,
    )                                                       # (TK, TQ) f32

    # Online softmax update (statistics along sublanes -> (1, TQ)).
    m_prev = m_sc[...]
    m_new = jnp.maximum(m_prev, jnp.max(s, axis=0, keepdims=True))
    alpha = jnp.exp(m_prev - m_new)                         # (1, TQ)
    p = jnp.exp(s - m_new)                                  # (TK, TQ)
    l_sc[...] = alpha * l_sc[...] + jnp.sum(p, axis=0, keepdims=True)
    # Note: an unconditional (C, T) rescale; a pl.when-guarded skip when the
    # running max is unchanged only pays off at large C.
    acc_sc[...] = alpha * acc_sc[...] + jnp.dot(
        v_ref[...], p.astype(jnp.bfloat16), preferred_element_type=jnp.float32)
    m_sc[...] = m_new

    @pl.when(ki == pl.num_programs(2) - 1)
    def _finalize():
        inv_l = pl.reciprocal(l_sc[...], approx=True)       # EUP vrcp
        o_ref[...] = (acc_sc[...] * inv_l + xres_ref[...]).astype(o_ref.dtype)


# ---------------------------------------------------------------------------
# Tile selection (largest-first, VMEM-budget aware, keeps both v7x TCs busy).
# ---------------------------------------------------------------------------
def _flash_vmem_bytes(t, c, c8):
    bf16, f32 = 2, 4
    inputs = 2 * (c8 * t * bf16          # Q tile (resident; budgeted at 2 bufs)
                  + c8 * t * bf16        # K tile (streamed, double-buffered)
                  + c * t * bf16         # V tile (streamed, double-buffered)
                  + c * t * f32)         # f32 residual tile
    outputs = 2 * c * t * f32
    scratch = (2 * t + c * t) * f32      # m, l, acc
    intermediates = 2 * t * t * f32      # score + probability tiles
    return inputs + outputs + scratch + intermediates


def _pick_block(n, c, c8, b, vmem_budget_bytes=24 * 1024 * 1024):
    fits = [t for t in (1024, 512, 256, 128)
            if n % t == 0 and _flash_vmem_bytes(t, c, c8) <= vmem_budget_bytes]
    for t in fits:
        if b * (n // t) >= 2:            # keep >= 2 parallel (b, qi) blocks
            return t
    if fits:
        return fits[0]
    # TODO(synk): generic padding path for N not a multiple of 128 (falls back
    # to a single full-extent tile, which is correct but un-tiled).
    return n


# ---------------------------------------------------------------------------
# Wrapper.
# ---------------------------------------------------------------------------
def attention_forward(x_nchw, w1, b1, w2, b2, w3, b3, *, block=None):
    """x_nchw: (B, C, H, W) f32. w1/w2: (C//8, C), w3: (C, C), biases 1-D."""
    B, C, H, W = x_nchw.shape
    N = H * W
    C8 = w1.shape[0]
    assert C >= 8 and w2.shape[0] == C8 and w3.shape[0] == C

    T = _pick_block(N, C, C8, B) if block is None else block
    assert N % T == 0, "pixel count must be divisible by the tile size"

    # Channel-major (torch .view) layout: (B, C, N).
    x_cn = x_nchw.reshape(B, C, N)                  # f32 residual path (exact)
    x_bf = x_cn.astype(jnp.bfloat16)                # bf16 projection input

    wq = w1.astype(jnp.bfloat16)
    wk = w2.astype(jnp.bfloat16)
    wv = w3.astype(jnp.bfloat16)
    bq = b1.reshape(C8, 1).astype(jnp.float32)
    bk = b2.reshape(C8, 1).astype(jnp.float32)
    bv = b3.reshape(C, 1).astype(jnp.float32)

    # ---- Stage 1: Q/K/V projections, stored bf16 in HBM. -------------------
    proj_bytes = (B * N * C * 2 + B * N * (2 * C8 + C) * 2
                  + (2 * C8 * C + C * C) * 2 + (2 * C8 + C) * 4)
    q, k, v = pl.pallas_call(
        _proj_kernel,
        out_shape=(jax.ShapeDtypeStruct((B, C8, N), jnp.bfloat16),
                   jax.ShapeDtypeStruct((B, C8, N), jnp.bfloat16),
                   jax.ShapeDtypeStruct((B, C, N), jnp.bfloat16)),
        grid_spec=pltpu.PrefetchScalarGridSpec(
            num_scalar_prefetch=0,
            grid=(B, N // T),
            in_specs=[
                pl.BlockSpec((None, C, T), lambda b, t: (b, 0, t)),   # x (bf16)
                pl.BlockSpec((C8, C), lambda b, t: (0, 0)),           # Wq
                pl.BlockSpec((C8, C), lambda b, t: (0, 0)),           # Wk
                pl.BlockSpec((C, C), lambda b, t: (0, 0)),            # Wv
                pl.BlockSpec((C8, 1), lambda b, t: (0, 0)),           # bq
                pl.BlockSpec((C8, 1), lambda b, t: (0, 0)),           # bk
                pl.BlockSpec((C, 1), lambda b, t: (0, 0)),            # bv
            ],
            out_specs=[
                pl.BlockSpec((None, C8, T), lambda b, t: (b, 0, t)),  # Q
                pl.BlockSpec((None, C8, T), lambda b, t: (b, 0, t)),  # K
                pl.BlockSpec((None, C, T), lambda b, t: (b, 0, t)),   # V
            ],
        ),
        compiler_params=pltpu.CompilerParams(
            dimension_semantics=("parallel", "parallel"),
            vmem_limit_bytes=32 * 1024 * 1024,
        ),
        cost_estimate=pl.CostEstimate(
            flops=2 * B * N * C * (2 * C8 + C),
            transcendentals=0,
            bytes_accessed=proj_bytes),
    )(x_bf, wq, wk, wv, bq, bk, bv)

    # ---- Stage 2: flash attention + residual. -------------------------------
    flash_bytes = (B * (N // T) * N * (C8 + C) * 2      # kv stream (re-fetched)
                   + B * N * C8 * 2                      # Q
                   + B * N * C * 4                       # residual
                   + B * N * C * 4)                      # output
    out_cn = pl.pallas_call(
        _flash_kernel,
        out_shape=jax.ShapeDtypeStruct((B, C, N), x_nchw.dtype),
        grid_spec=pltpu.PrefetchScalarGridSpec(
            num_scalar_prefetch=0,
            grid=(B, N // T, N // T),
            in_specs=[
                pl.BlockSpec((None, C8, T), lambda b, qi, ki: (b, 0, qi)),  # Q
                pl.BlockSpec((None, C8, T), lambda b, qi, ki: (b, 0, ki)),  # K
                pl.BlockSpec((None, C, T), lambda b, qi, ki: (b, 0, ki)),   # V
                pl.BlockSpec((None, C, T), lambda b, qi, ki: (b, 0, qi)),   # x residual
            ],
            out_specs=pl.BlockSpec((None, C, T), lambda b, qi, ki: (b, 0, qi)),
            scratch_shapes=[
                pltpu.VMEM((1, T), jnp.float32),    # running max
                pltpu.VMEM((1, T), jnp.float32),    # running sum
                pltpu.VMEM((C, T), jnp.float32),    # PV accumulator
            ],
        ),
        compiler_params=pltpu.CompilerParams(
            dimension_semantics=("parallel", "parallel", "arbitrary"),
            vmem_limit_bytes=32 * 1024 * 1024,
        ),
        cost_estimate=pl.CostEstimate(
            flops=2 * B * N * N * (C8 + C),
            transcendentals=B * N * N,
            bytes_accessed=flash_bytes),
    )(q, k, v, x_cn)

    return out_cn.reshape(B, C, H, W)


# ---------------------------------------------------------------------------
# Pure-JAX f32 reference mirroring the PyTorch forward exactly.
# ---------------------------------------------------------------------------
def attention_reference(x_nchw, w1, b1, w2, b2, w3, b3):
    B, C, H, W = x_nchw.shape
    N = H * W

    def conv1x1(x, w, b):  # x: (B,C,H,W), w: (Co,C), b: (Co,)
        return jnp.einsum("bchw,oc->bohw", x, w) + b[None, :, None, None]

    q = conv1x1(x_nchw, w1, b1).reshape(B, -1, N).transpose(0, 2, 1)   # (B, N, C8)
    k = conv1x1(x_nchw, w2, b2).reshape(B, -1, N)                      # (B, C8, N)
    energy = jnp.einsum("bnk,bkm->bnm", q, k)                          # (B, N, N)
    attn = jax.nn.softmax(energy, axis=-1)
    v = conv1x1(x_nchw, w3, b3).reshape(B, -1, N)                      # (B, C, N)
    out = jnp.einsum("bcn,bmn->bcm", v, attn)                          # (B, C, N)
    return out.reshape(B, C, H, W) + x_nchw


if __name__ == "__main__":
    B, C, H, W = 2, 16, 32, 32          # N = 1024, C8 = 2
    C8 = C // 8

    key = jax.random.PRNGKey(0)
    kx, k1, k2, k3, k4, k5, k6 = jax.random.split(key, 7)

    x = jax.random.normal(kx, (B, C, H, W), dtype=jnp.float32)
    w1 = jax.random.normal(k1, (C8, C), dtype=jnp.float32) * 0.1
    b1 = jax.random.normal(k2, (C8,), dtype=jnp.float32) * 0.1
    w2 = jax.random.normal(k3, (C8, C), dtype=jnp.float32) * 0.1
    b2 = jax.random.normal(k4, (C8,), dtype=jnp.float32) * 0.1
    w3 = jax.random.normal(k5, (C, C), dtype=jnp.float32) * 0.1
    b3 = jax.random.normal(k6, (C,), dtype=jnp.float32) * 0.1

    ref = attention_reference(x, w1, b1, w2, b2, w3, b3)

    # Auto-picked tile (largest that fits VMEM, keeps both TCs busy).
    out_auto = jax.block_until_ready(attention_forward(x, w1, b1, w2, b2, w3, b3))
    # Smaller tile to exercise the multi-kv-step online-softmax path.
    out_tiled = jax.block_until_ready(
        attention_forward(x, w1, b1, w2, b2, w3, b3, block=256))

    for name, out in (("auto", out_auto), ("T=256", out_tiled)):
        assert out.shape == (B, C, H, W)
        err = float(jnp.max(jnp.abs(out - ref)))
        # bf16 Q/K/V + bf16 MXU operands + approx reciprocal -> loose tolerance.
        assert jnp.allclose(out, ref, atol=2e-2, rtol=2e-2), (
            f"{name}: mismatch vs reference (max abs err {err})")

    print("KERNEL_OK")
</pallas_src>

<mosaic_0001>
module attributes {stable_mosaic.version = 11 : i64} {
  func.func @_proj_kernel(%arg0: i32, %arg1: i32, %arg2: memref<1x16x1024xbf16, #tpu.memory_space<vmem>>, %arg3: memref<2x16xbf16, #tpu.memory_space<vmem>>, %arg4: memref<2x16xbf16, #tpu.memory_space<vmem>>, %arg5: memref<16x16xbf16, #tpu.memory_space<vmem>>, %arg6: memref<2x1xf32, #tpu.memory_space<vmem>>, %arg7: memref<2x1xf32, #tpu.memory_space<vmem>>, %arg8: memref<16x1xf32, #tpu.memory_space<vmem>>, %arg9: memref<1x2x1024xbf16, #tpu.memory_space<vmem>>, %arg10: memref<1x2x1024xbf16, #tpu.memory_space<vmem>>, %arg11: memref<1x16x1024xbf16, #tpu.memory_space<vmem>>) attributes {dimension_semantics = [#tpu.dimension_semantics<parallel>, #tpu.dimension_semantics<parallel>], iteration_bounds = array<i64: 2, 1>, scalar_prefetch = 0 : i64, scratch_operands = 0 : i64, tpu.core_type = #tpu.core_type<tc>, window_params = [{transform_indices = @transform_0, window_bounds = array<i64: 1, 16, 1024>}, {pipeline_mode = #tpu.pipeline_mode<synchronous>, transform_indices = @transform_1, window_bounds = array<i64: 2, 16>}, {pipeline_mode = #tpu.pipeline_mode<synchronous>, transform_indices = @transform_2, window_bounds = array<i64: 2, 16>}, {pipeline_mode = #tpu.pipeline_mode<synchronous>, transform_indices = @transform_3, window_bounds = array<i64: 16, 16>}, {pipeline_mode = #tpu.pipeline_mode<synchronous>, transform_indices = @transform_4, window_bounds = array<i64: 2, 1>}, {pipeline_mode = #tpu.pipeline_mode<synchronous>, transform_indices = @transform_5, window_bounds = array<i64: 2, 1>}, {pipeline_mode = #tpu.pipeline_mode<synchronous>, transform_indices = @transform_6, window_bounds = array<i64: 16, 1>}, {transform_indices = @transform_7, window_bounds = array<i64: 1, 2, 1024>}, {transform_indices = @transform_8, window_bounds = array<i64: 1, 2, 1024>}, {transform_indices = @transform_9, window_bounds = array<i64: 1, 16, 1024>}]} {
    %c0 = arith.constant 0 : index
    %c0_0 = arith.constant 0 : index
    %c0_1 = arith.constant 0 : index
    %0 = vector.load %arg2[%c0, %c0_0, %c0_1] : memref<1x16x1024xbf16, #tpu.memory_space<vmem>>, vector<1x16x1024xbf16>
    %1 = vector.shape_cast %0 : vector<1x16x1024xbf16> to vector<16x1024xbf16>
    %c0_2 = arith.constant 0 : index
    %c0_3 = arith.constant 0 : index
    %2 = vector.load %arg3[%c0_2, %c0_3] : memref<2x16xbf16, #tpu.memory_space<vmem>>, vector<2x16xbf16>
    %cst = arith.constant dense<0.000000e+00> : vector<2x1024xf32>
    %3 = tpu.matmul %2, %1, %cst {dimension_numbers = #tpu.dot_dimension_numbers<[1], [0], [0], [1], [0, 0, 1, 1], [], []>} : vector<2x16xbf16>, vector<16x1024xbf16>, vector<2x1024xf32> -> vector<2x1024xf32>
    %c0_4 = arith.constant 0 : index
    %c0_5 = arith.constant 0 : index
    %4 = vector.load %arg6[%c0_4, %c0_5] : memref<2x1xf32, #tpu.memory_space<vmem>>, vector<2x1xf32>
    %5 = vector.broadcast %4 : vector<2x1xf32> to vector<2x1024xf32>
    %6 = arith.addf %3, %5 : vector<2x1024xf32>
    %7 = arith.truncf %6 : vector<2x1024xf32> to vector<2x1024xbf16>
    %c0_6 = arith.constant 0 : index
    %c0_7 = arith.constant 0 : index
    %c0_8 = arith.constant 0 : index
    %8 = vector.load %arg9[%c0_6, %c0_7, %c0_8] : memref<1x2x1024xbf16, #tpu.memory_space<vmem>>, vector<1x2x1024xbf16>
    %9 = vector.shape_cast %8 : vector<1x2x1024xbf16> to vector<2x1024xbf16>
    %10 = vector.shape_cast %7 : vector<2x1024xbf16> to vector<1x2x1024xbf16>
    tpu.vector_store %arg9[%c0_6, %c0_7, %c0_8], %10 {strides = array<i32>} : memref<1x2x1024xbf16, #tpu.memory_space<vmem>>, vector<1x2x1024xbf16>,
    %c0_9 = arith.constant 0 : index
    %c0_10 = arith.constant 0 : index
    %11 = vector.load %arg4[%c0_9, %c0_10] : memref<2x16xbf16, #tpu.memory_space<vmem>>, vector<2x16xbf16>
    %cst_11 = arith.constant dense<0.000000e+00> : vector<2x1024xf32>
    %12 = tpu.matmul %11, %1, %cst_11 {dimension_numbers = #tpu.dot_dimension_numbers<[1], [0], [0], [1], [0, 0, 1, 1], [], []>} : vector<2x16xbf16>, vector<16x1024xbf16>, vector<2x1024xf32> -> vector<2x1024xf32>
    %c0_12 = arith.constant 0 : index
    %c0_13 = arith.constant 0 : index
    %13 = vector.load %arg7[%c0_12, %c0_13] : memref<2x1xf32, #tpu.memory_space<vmem>>, vector<2x1xf32>
    %14 = vector.broadcast %13 : vector<2x1xf32> to vector<2x1024xf32>
    %15 = arith.addf %12, %14 : vector<2x1024xf32>
    %16 = arith.truncf %15 : vector<2x1024xf32> to vector<2x1024xbf16>
    %c0_14 = arith.constant 0 : index
    %c0_15 = arith.constant 0 : index
    %c0_16 = arith.constant 0 : index
    %17 = vector.load %arg10[%c0_14, %c0_15, %c0_16] : memref<1x2x1024xbf16, #tpu.memory_space<vmem>>, vector<1x2x1024xbf16>
    %18 = vector.shape_cast %17 : vector<1x2x1024xbf16> to vector<2x1024xbf16>
    %19 = vector.shape_cast %16 : vector<2x1024xbf16> to vector<1x2x1024xbf16>
    tpu.vector_store %arg10[%c0_14, %c0_15, %c0_16], %19 {strides = array<i32>} : memref<1x2x1024xbf16, #tpu.memory_space<vmem>>, vector<1x2x1024xbf16>,
    %c0_17 = arith.constant 0 : index
    %c0_18 = arith.constant 0 : index
    %20 = vector.load %arg5[%c0_17, %c0_18] : memref<16x16xbf16, #tpu.memory_space<vmem>>, vector<16x16xbf16>
    %cst_19 = arith.constant dense<0.000000e+00> : vector<16x1024xf32>
    %21 = tpu.matmul %20, %1, %cst_19 {dimension_numbers = #tpu.dot_dimension_numbers<[1], [0], [0], [1], [0, 0, 1, 1], [], []>} : vector<16x16xbf16>, vector<16x1024xbf16>, vector<16x1024xf32> -> vector<16x1024xf32>
    %c0_20 = arith.constant 0 : index
    %c0_21 = arith.constant 0 : index
    %22 = vector.load %arg8[%c0_20, %c0_21] : memref<16x1xf32, #tpu.memory_space<vmem>>, vector<16x1xf32>
    %23 = vector.broadcast %22 : vector<16x1xf32> to vector<16x1024xf32>
    %24 = arith.addf %21, %23 : vector<16x1024xf32>
    %25 = arith.truncf %24 : vector<16x1024xf32> to vector<16x1024xbf16>
    %c0_22 = arith.constant 0 : index
    %c0_23 = arith.constant 0 : index
    %c0_24 = arith.constant 0 : index
    %26 = vector.load %arg11[%c0_22, %c0_23, %c0_24] : memref<1x16x1024xbf16, #tpu.memory_space<vmem>>, vector<1x16x1024xbf16>
    %27 = vector.shape_cast %26 : vector<1x16x1024xbf16> to vector<16x1024xbf16>
    %28 = vector.shape_cast %25 : vector<16x1024xbf16> to vector<1x16x1024xbf16>
    tpu.vector_store %arg11[%c0_22, %c0_23, %c0_24], %28 {strides = array<i32>} : memref<1x16x1024xbf16, #tpu.memory_space<vmem>>, vector<1x16x1024xbf16>,
    return
  }
  func.func @transform_0(%arg0: i32, %arg1: i32) -> (i32, i32, i32) {
    %c0_i32 = arith.constant 0 : i32
    %c0_i32_0 = arith.constant 0 : i32
    return %arg0, %c0_i32, %arg1 : i32, i32, i32
  }
  func.func @transform_1(%arg0: i32, %arg1: i32) -> (i32, i32) {
    %c0_i32 = arith.constant 0 : i32
    %c0_i32_0 = arith.constant 0 : i32
    %c0_i32_1 = arith.constant 0 : i32
    return %c0_i32, %c0_i32_0 : i32, i32
  }
  func.func @transform_2(%arg0: i32, %arg1: i32) -> (i32, i32) {
    %c0_i32 = arith.constant 0 : i32
    %c0_i32_0 = arith.constant 0 : i32
    %c0_i32_1 = arith.constant 0 : i32
    return %c0_i32, %c0_i32_0 : i32, i32
  }
  func.func @transform_3(%arg0: i32, %arg1: i32) -> (i32, i32) {
    %c0_i32 = arith.constant 0 : i32
    %c0_i32_0 = arith.constant 0 : i32
    %c0_i32_1 = arith.constant 0 : i32
    return %c0_i32, %c0_i32_0 : i32, i32
  }
  func.func @transform_4(%arg0: i32, %arg1: i32) -> (i32, i32) {
    %c0_i32 = arith.constant 0 : i32
    %c0_i32_0 = arith.constant 0 : i32
    %c0_i32_1 = arith.constant 0 : i32
    return %c0_i32, %c0_i32_0 : i32, i32
  }
  func.func @transform_5(%arg0: i32, %arg1: i32) -> (i32, i32) {
    %c0_i32 = arith.constant 0 : i32
    %c0_i32_0 = arith.constant 0 : i32
    %c0_i32_1 = arith.constant 0 : i32
    return %c0_i32, %c0_i32_0 : i32, i32
  }
  func.func @transform_6(%arg0: i32, %arg1: i32) -> (i32, i32) {
    %c0_i32 = arith.constant 0 : i32
    %c0_i32_0 = arith.constant 0 : i32
    %c0_i32_1 = arith.constant 0 : i32
    return %c0_i32, %c0_i32_0 : i32, i32
  }
  func.func @transform_7(%arg0: i32, %arg1: i32) -> (i32, i32, i32) {
    %c0_i32 = arith.constant 0 : i32
    %c0_i32_0 = arith.constant 0 : i32
    return %arg0, %c0_i32, %arg1 : i32, i32, i32
  }
  func.func @transform_8(%arg0: i32, %arg1: i32) -> (i32, i32, i32) {
    %c0_i32 = arith.constant 0 : i32
    %c0_i32_0 = arith.constant 0 : i32
    return %arg0, %c0_i32, %arg1 : i32, i32, i32
  }
  func.func @transform_9(%arg0: i32, %arg1: i32) -> (i32, i32, i32) {
    %c0_i32 = arith.constant 0 : i32
    %c0_i32_0 = arith.constant 0 : i32
    return %arg0, %c0_i32, %arg1 : i32, i32, i32
  }
}

</mosaic_0001>

<llo_original>
// kernel: tpu_custom_call.1
$region0: #{tpu_custom_call.1}
  #allocation0 [shape = 'u32[]', space=smem, size = 0x4, offset = 0x4, fixed_abs, tag = 'smem constant byte address 0x4 - core index']
  #allocation1 [shape = 'u32[72,128]{1,0:T(1,128)}', space=vmem, size = 0x9000, scoped, tag = 'internal scratch']
  %s0 = inlined_call_operand.hbm [shape: bf16[2,16,1024], index: 0, kind: input, shape index: {}]
  %s1 = inlined_call_operand.vmem [shape: bf16[2,16], index: 1, kind: input, shape index: {}]
  %s2 = inlined_call_operand.vmem [shape: bf16[2,16], index: 2, kind: input, shape index: {}]
  %s3 = inlined_call_operand.vmem [shape: bf16[16,16], index: 3, kind: input, shape index: {}]
  %s4 = inlined_call_operand.vmem [shape: f32[2,1], index: 4, kind: input, shape index: {}]
  %s5 = inlined_call_operand.vmem [shape: f32[2,1], index: 5, kind: input, shape index: {}]
  %s6 = inlined_call_operand.vmem [shape: f32[16,1], index: 6, kind: input, shape index: {}]
  %s7 = inlined_call_operand.hbm [shape: bf16[2,2,1024], index: 7, kind: output, shape index: {0}]
  %s8 = inlined_call_operand.hbm [shape: bf16[2,2,1024], index: 8, kind: output, shape index: {1}]
  %s9 = inlined_call_operand.hbm [shape: bf16[2,16,1024], index: 9, kind: output, shape index: {2}]
  %10 = xla_tuple %s7, %s8, %s9
  %s11 = sld [smem:[#allocation0]]
  $region81: #{tpu_custom_call.1} parent=0
    _
  %s13 = ssub.s32 1, %s11
  %s14 = scalar_select 0, %s13, %s11
  $region1: #{tpu_custom_call.1} parent=0
    #allocation2 [shape = 'u8[65536]{0}', space=vmem, size = 0x10000, scoped, tag = 'input window, operand 0']
    #allocation3 [shape = 's32[2]{0}', space=sflag, size = 0x8, scoped, tag = 'scoped memory for tpu_custom_call.1']
    #allocation4 [shape = 's32[2]{0}', space=sflag, size = 0x8, scoped, tag = 'scoped memory for tpu_custom_call.1']
    #allocation5 [shape = 'u8[8192]{0}', space=vmem, size = 0x2000, scoped, tag = 'output window, operand 0']
    #allocation6 [shape = 'u8[8192]{0}', space=vmem, size = 0x2000, scoped, tag = 'output window, operand 1']
    #allocation7 [shape = 's32[2]{0}', space=sflag, size = 0x8, scoped, tag = 'scoped memory for tpu_custom_call.1']
    #allocation8 [shape = 'u8[65536]{0}', space=vmem, size = 0x10000, scoped, tag = 'output window, operand 2']
    %15 = vsyncpa [#allocation3], 0
    %s16 = scalar_lea.sflag [#allocation3], 1
    %17 = vsyncpa %s16, 0
    %18 = vsyncpa [#allocation4], 0
    %s19 = scalar_lea.sflag [#allocation4], 1
    %20 = vsyncpa %s19, 0
    %21 = vsyncpa [#allocation7], 0
    %s22 = scalar_lea.sflag [#allocation7], 1
    %23 = vsyncpa %s22, 0
    loop: start=0, step=1, limit=4
    $region2: #{tpu_custom_call.1} parent=1 // loop_pre_header
      _
    $region3: #{tpu_custom_call.1} parent=1 // loop_header
      %s25 = sphi 0, %s29
      %p26 = scmp.ge.s32.totalorder %s25, 4
      %s32 = sphi 0, %s44
      %s33 = sphi 0, %s40
      %s34 = sphi 0, %s32
      %s35 = sphi 0, %s33
      %s36 = sphi 0, %s34
      %s37 = sphi 0, %s35
      %s49 = sphi 0, %s51
      %s52 = sphi 0, %s49
      %s53 = sphi 0, %s52
      %s69 = sphi 0, %s53
      %s73 = sphi 0, %s73
      %s75 = sphi 0, %s73
      %s76 = sphi 0, %s75
      %s90 = sphi 0, %s76
      %s94 = sphi 0, %s94
      %s96 = sphi 0, %s94
      %s97 = sphi 0, %s96
      %s111 = sphi 0, %s97
      %s115 = sphi 0, %s115
      %s117 = sphi 0, %s115
      %s118 = sphi 0, %s117
      %s132 = sphi 0, %s118
      %s136 = sphi 0, %s136
      %s138 = sphi 0, %s136
      %s139 = sphi 0, %s138
      %s153 = sphi 0, %s139
      %s157 = sphi 0, %s157
      %s159 = sphi 0, %s157
      %s160 = sphi 0, %s159
      %s174 = sphi 0, %s160
      %s178 = sphi 0, %s178
      %s180 = sphi 0, %s178
      %s181 = sphi 0, %s180
      %s195 = sphi 0, %s181
      %s203 = sphi 0, %s205
      %s206 = sphi 0, %s203
      %s207 = sphi 0, %s206
      %s223 = sphi 0, %s207
      %s231 = sphi 0, %s233
      %s234 = sphi 0, %s231
      %s235 = sphi 0, %s234
      %s251 = sphi 0, %s235
      %s259 = sphi 0, %s261
      %s262 = sphi 0, %s259
      %s263 = sphi 0, %s262
      %s279 = sphi 0, %s263
    $region4: #{tpu_custom_call.1} parent=1 // loop_header_branch
      %28 = sbr.rel (%p26) target = $region8
    $region5: #{tpu_custom_call.1} parent=1 // loop_body
      %s30 = ssub.s32 %s25, 1
      %s31 = ssub.s32 %s25, 2
      %s38 = sadd.s32 1, %s33
      %p39 = scmp.ge.s32.totalorder %s38, 1
      %s40 = scalar_select %p39, 0, %s38
      %s41 = sadd.s32 1, %s32
      %s42 = scalar_select %p39, %s41, %s32
      %p43 = scmp.ge.s32.totalorder %s42, 2
      %s44 = scalar_select %p43, 0, %s42
      %s45 = ssub.s32 %s32, %s44
      %s46 = ssub.s32 %s33, %s40
      %s47 = sor.u32 %s45, %s46
      %p48 = scmp.eq.s32.totalorder %s47, 0
      %s50 = sadd.s32 %s49, 1
      %s51 = scalar_select %p48, %s49, %s50
      %p54 = pneg %p48
      %p55 = scmp.eq.s32.totalorder %s25, 1
      %p56 = por %p54, %p55
      %p57 = scmp.ne.s32.totalorder %s49, %s52
      %p58 = scmp.eq.s32.totalorder %s25, 0
      %p59 = por %p57, %p58
      %p60 = scmp.ne.s32.totalorder %s49, %s52
      %p61 = scmp.eq.s32.totalorder %s30, 1
      %p62 = por %p60, %p61
      %p63 = scmp.ne.s32.totalorder %s52, %s53
      %p64 = scmp.eq.s32.totalorder %s30, 0
      %p65 = por %p63, %p64
      %p66 = scmp.ne.s32.totalorder %s52, %s53
      %p67 = scmp.eq.s32.totalorder %s31, 1
      %p68 = por %p66, %p67
      %p70 = scmp.ne.s32.totalorder %s53, %s69
      %p71 = scmp.eq.s32.totalorder %s31, 0
      %p72 = por %p70, %p71
      %s74 = sadd.s32 %s73, 1
      %p77 = scmp.eq.s32.totalorder %s25, 1
      %p78 = scmp.ne.s32.totalorder %s73, %s75
      %p79 = scmp.eq.s32.totalorder %s25, 0
      %p80 = por %p78, %p79
      %p81 = scmp.ne.s32.totalorder %s73, %s75
      %p82 = scmp.eq.s32.totalorder %s30, 1
      %p83 = por %p81, %p82
      %p84 = scmp.ne.s32.totalorder %s75, %s76
      %p85 = scmp.eq.s32.totalorder %s30, 0
      %p86 = por %p84, %p85
      %p87 = scmp.ne.s32.totalorder %s75, %s76
      %p88 = scmp.eq.s32.totalorder %s31, 1
      %p89 = por %p87, %p88
      %p91 = scmp.ne.s32.totalorder %s76, %s90
      %p92 = scmp.eq.s32.totalorder %s31, 0
      %p93 = por %p91, %p92
      %s95 = sadd.s32 %s94, 1
      %p98 = scmp.eq.s32.totalorder %s25, 1
      %p99 = scmp.ne.s32.totalorder %s94, %s96
      %p100 = scmp.eq.s32.totalorder %s25, 0
      %p101 = por %p99, %p100
      %p102 = scmp.ne.s32.totalorder %s94, %s96
      %p103 = scmp.eq.s32.totalorder %s30, 1
      %p104 = por %p102, %p103
      %p105 = scmp.ne.s32.totalorder %s96, %s97
      %p106 = scmp.eq.s32.totalorder %s30, 0
      %p107 = por %p105, %p106
      %p108 = scmp.ne.s32.totalorder %s96, %s97
      %p109 = scmp.eq.s32.totalorder %s31, 1
      %p110 = por %p108, %p109
      %p112 = scmp.ne.s32.totalorder %s97, %s111
      %p113 = scmp.eq.s32.totalorder %s31, 0
      %p114 = por %p112, %p113
      %s116 = sadd.s32 %s115, 1
      %p119 = scmp.eq.s32.totalorder %s25, 1
      %p120 = scmp.ne.s32.totalorder %s115, %s117
      %p121 = scmp.eq.s32.totalorder %s25, 0
      %p122 = por %p120, %p121
      %p123 = scmp.ne.s32.totalorder %s115, %s117
      %p124 = scmp.eq.s32.totalorder %s30, 1
      %p125 = por %p123, %p124
      %p126 = scmp.ne.s32.totalorder %s117, %s118
      %p127 = scmp.eq.s32.totalorder %s30, 0
      %p128 = por %p126, %p127
      %p129 = scmp.ne.s32.totalorder %s117, %s118
      %p130 = scmp.eq.s32.totalorder %s31, 1
      %p131 = por %p129, %p130
      %p133 = scmp.ne.s32.totalorder %s118, %s132
      %p134 = scmp.eq.s32.totalorder %s31, 0
      %p135 = por %p133, %p134
      %s137 = sadd.s32 %s136, 1
      %p140 = scmp.eq.s32.totalorder %s25, 1
      %p141 = scmp.ne.s32.totalorder %s136, %s138
      %p142 = scmp.eq.s32.totalorder %s25, 0
      %p143 = por %p141, %p142
      %p144 = scmp.ne.s32.totalorder %s136, %s138
      %p145 = scmp.eq.s32.totalorder %s30, 1
      %p146 = por %p144, %p145
      %p147 = scmp.ne.s32.totalorder %s138, %s139
      %p148 = scmp.eq.s32.totalorder %s30, 0
      %p149 = por %p147, %p148
      %p150 = scmp.ne.s32.totalorder %s138, %s139
      %p151 = scmp.eq.s32.totalorder %s31, 1
      %p152 = por %p150, %p151
      %p154 = scmp.ne.s32.totalorder %s139, %s153
      %p155 = scmp.eq.s32.totalorder %s31, 0
      %p156 = por %p154, %p155
      %s158 = sadd.s32 %s157, 1
      %p161 = scmp.eq.s32.totalorder %s25, 1
      %p162 = scmp.ne.s32.totalorder %s157, %s159
      %p163 = scmp.eq.s32.totalorder %s25, 0
      %p164 = por %p162, %p163
      %p165 = scmp.ne.s32.totalorder %s157, %s159
      %p166 = scmp.eq.s32.totalorder %s30, 1
      %p167 = por %p165, %p166
      %p168 = scmp.ne.s32.totalorder %s159, %s160
      %p169 = scmp.eq.s32.totalorder %s30, 0
      %p170 = por %p168, %p169
      %p171 = scmp.ne.s32.totalorder %s159, %s160
      %p172 = scmp.eq.s32.totalorder %s31, 1
      %p173 = por %p171, %p172
      %p175 = scmp.ne.s32.totalorder %s160, %s174
      %p176 = scmp.eq.s32.totalorder %s31, 0
      %p177 = por %p175, %p176
      %s179 = sadd.s32 %s178, 1
      %p182 = scmp.eq.s32.totalorder %s25, 1
      %p183 = scmp.ne.s32.totalorder %s178, %s180
      %p184 = scmp.eq.s32.totalorder %s25, 0
      %p185 = por %p183, %p184
      %p186 = scmp.ne.s32.totalorder %s178, %s180
      %p187 = scmp.eq.s32.totalorder %s30, 1
      %p188 = por %p186, %p187
      %p189 = scmp.ne.s32.totalorder %s180, %s181
      %p190 = scmp.eq.s32.totalorder %s30, 0
      %p191 = por %p189, %p190
      %p192 = scmp.ne.s32.totalorder %s180, %s181
      %p193 = scmp.eq.s32.totalorder %s31, 1
      %p194 = por %p192, %p193
      %p196 = scmp.ne.s32.totalorder %s181, %s195
      %p197 = scmp.eq.s32.totalorder %s31, 0
      %p198 = por %p196, %p197
      %s199 = ssub.s32 %s32, %s44
      %s200 = ssub.s32 %s33, %s40
      %s201 = sor.u32 %s199, %s200
      %p202 = scmp.eq.s32.totalorder %s201, 0
      %s204 = sadd.s32 %s203, 1
      %s205 = scalar_select %p202, %s203, %s204
      %p208 = pneg %p202
      %p209 = scmp.eq.s32.totalorder %s25, 1
      %p210 = por %p208, %p209
      %p211 = scmp.ne.s32.totalorder %s203, %s206
      %p212 = scmp.eq.s32.totalorder %s25, 0
      %p213 = por %p211, %p212
      %p214 = scmp.ne.s32.totalorder %s203, %s206
      %p215 = scmp.eq.s32.totalorder %s30, 1
      %p216 = por %p214, %p215
      %p217 = scmp.ne.s32.totalorder %s206, %s207
      %p218 = scmp.eq.s32.totalorder %s30, 0
      %p219 = por %p217, %p218
      %p220 = scmp.ne.s32.totalorder %s206, %s207
      %p221 = scmp.eq.s32.totalorder %s31, 1
      %p222 = por %p220, %p221
      %p224 = scmp.ne.s32.totalorder %s207, %s223
      %p225 = scmp.eq.s32.totalorder %s31, 0
      %p226 = por %p224, %p225
      %s227 = ssub.s32 %s32, %s44
      %s228 = ssub.s32 %s33, %s40
      %s229 = sor.u32 %s227, %s228
      %p230 = scmp.eq.s32.totalorder %s229, 0
      %s232 = sadd.s32 %s231, 1
      %s233 = scalar_select %p230, %s231, %s232
      %p236 = pneg %p230
      %p237 = scmp.eq.s32.totalorder %s25, 1
      %p238 = por %p236, %p237
      %p239 = scmp.ne.s32.totalorder %s231, %s234
      %p240 = scmp.eq.s32.totalorder %s25, 0
      %p241 = por %p239, %p240
      %p242 = scmp.ne.s32.totalorder %s231, %s234
      %p243 = scmp.eq.s32.totalorder %s30, 1
      %p244 = por %p242, %p243
      %p245 = scmp.ne.s32.totalorder %s234, %s235
      %p246 = scmp.eq.s32.totalorder %s30, 0
      %p247 = por %p245, %p246
      %p248 = scmp.ne.s32.totalorder %s234, %s235
      %p249 = scmp.eq.s32.totalorder %s31, 1
      %p250 = por %p248, %p249
      %p252 = scmp.ne.s32.totalorder %s235, %s251
      %p253 = scmp.eq.s32.totalorder %s31, 0
      %p254 = por %p252, %p253
      %s255 = ssub.s32 %s32, %s44
      %s256 = ssub.s32 %s33, %s40
      %s257 = sor.u32 %s255, %s256
      %p258 = scmp.eq.s32.totalorder %s257, 0
      %s260 = sadd.s32 %s259, 1
      %s261 = scalar_select %p258, %s259, %s260
      %p264 = pneg %p258
      %p265 = scmp.eq.s32.totalorder %s25, 1
      %p266 = por %p264, %p265
      %p267 = scmp.ne.s32.totalorder %s259, %s262
      %p268 = scmp.eq.s32.totalorder %s25, 0
      %p269 = por %p267, %p268
      %p270 = scmp.ne.s32.totalorder %s259, %s262
      %p271 = scmp.eq.s32.totalorder %s30, 1
      %p272 = por %p270, %p271
      %p273 = scmp.ne.s32.totalorder %s262, %s263
      %p274 = scmp.eq.s32.totalorder %s30, 0
      %p275 = por %p273, %p274
      %p276 = scmp.ne.s32.totalorder %s262, %s263
      %p277 = scmp.eq.s32.totalorder %s31, 1
      %p278 = por %p276, %p277
      %p280 = scmp.ne.s32.totalorder %s263, %s279
      %p281 = scmp.eq.s32.totalorder %s31, 0
      %p282 = por %p280, %p281
      %p283 = scmp.le.s32.totalorder 1, %s25
      %p284 = scmp.lt.s32.totalorder %s25, 3
      %p285 = pnand %p283, %p284
      %p286 = pneg %p285
      // Predicated region
      $region9: #{tpu_custom_call.1} parent=5 // pred_check
        _
      $region10: #{tpu_custom_call.1} parent=5 // pred_check_branch
        %288 = sbr.rel (%p285) target = $region12
      $region11: #{tpu_custom_call.1} parent=5 // pred_region
        %s289 = ssub.s32 %s25, 1
        // Predicated region
        $region13: #{tpu_custom_call.1} parent=11 // pred_check
          %p290 = pneg %p86
        $region14: #{tpu_custom_call.1} parent=11 // pred_check_branch
          %292 = sbr.rel (%p290) target = $region16
        $region15: #{tpu_custom_call.1} parent=11 // pred_region
          _
        $region16: #{tpu_custom_call.1} parent=11 // pred_fallthru
          _
        // Predicated region
        $region17: #{tpu_custom_call.1} parent=11 // pred_check
          %p293 = pneg %p107
        $region18: #{tpu_custom_call.1} parent=11 // pred_check_branch
          %295 = sbr.rel (%p293) target = $region20
        $region19: #{tpu_custom_call.1} parent=11 // pred_region
          _
        $region20: #{tpu_custom_call.1} parent=11 // pred_fallthru
          _
        // Predicated region
        $region21: #{tpu_custom_call.1} parent=11 // pred_check
          %p296 = pneg %p128
        $region22: #{tpu_custom_call.1} parent=11 // pred_check_branch
          %298 = sbr.rel (%p296) target = $region24
        $region23: #{tpu_custom_call.1} parent=11 // pred_region
          _
        $region24: #{tpu_custom_call.1} parent=11 // pred_fallthru
          _
        // Predicated region
        $region25: #{tpu_custom_call.1} parent=11 // pred_check
          %p299 = pneg %p149
        $region26: #{tpu_custom_call.1} parent=11 // pred_check_branch
          %301 = sbr.rel (%p299) target = $region28
        $region27: #{tpu_custom_call.1} parent=11 // pred_region
          _
        $region28: #{tpu_custom_call.1} parent=11 // pred_fallthru
          _
        // Predicated region
        $region29: #{tpu_custom_call.1} parent=11 // pred_check
          %p302 = pneg %p170
        $region30: #{tpu_custom_call.1} parent=11 // pred_check_branch
          %304 = sbr.rel (%p302) target = $region32
        $region31: #{tpu_custom_call.1} parent=11 // pred_region
          _
        $region32: #{tpu_custom_call.1} parent=11 // pred_fallthru
          _
        // Predicated region
        $region33: #{tpu_custom_call.1} parent=11 // pred_check
          %p305 = pneg %p191
        $region34: #{tpu_custom_call.1} parent=11 // pred_check_branch
          %307 = sbr.rel (%p305) target = $region36
        $region35: #{tpu_custom_call.1} parent=11 // pred_region
          _
        $region36: #{tpu_custom_call.1} parent=11 // pred_fallthru
          _
      $region12: #{tpu_custom_call.1} parent=5 // pred_fallthru
        _
      %p308 = scmp.lt.s32.totalorder %s25, 2
      // Predicated region
      $region37: #{tpu_custom_call.1} parent=5 // pred_check
        %p309 = pneg %p308
      $region38: #{tpu_custom_call.1} parent=5 // pred_check_branch
        %311 = sbr.rel (%p309) target = $region40
      $region39: #{tpu_custom_call.1} parent=5 // pred_region
        // Predicated region
        $region41: #{tpu_custom_call.1} parent=39 // pred_check
          %p312 = pneg %p59
        $region42: #{tpu_custom_call.1} parent=39 // pred_check_branch
          %314 = sbr.rel (%p312) target = $region44
        $region43: #{tpu_custom_call.1} parent=39 // pred_region
          %s315 = sand.u32 %s49, 1
          %s316 = scalar_lea.sflag [#allocation3], %s315
          %s317 = sand.u32 %s49, 1
          %s318 = smul.addr %s317, 64
          %s319 = scalar_lea.vmem [#allocation2], %s318
          %s320 = smul.u32 8, %s33
          %322 = vsyncadd %s316, 0
          %s323 = smul.addr %s32, 16
          %s324 = sadd.s32 %s320, %s323
          %s325 = smul.addr %s324, 4
          %s326 = scalar_lea.hbm %s0, %s325
          %s327 = sshll.u32 %s326, 4
          %s328 = int_to_ptr.hbm [resolvable:$true] %s327
          %s329 = sshll.u32 %s319, 4
          %s330 = int_to_ptr.vmem [resolvable:$true] %s329
          %335 = dma.hbm_to_vmem [thread:$0]  %s328, 1024, %s330, %s316, 512, 512, 32
        $region44: #{tpu_custom_call.1} parent=39 // pred_fallthru
          _
      $region40: #{tpu_custom_call.1} parent=5 // pred_fallthru
        _
      %p336 = scmp.le.s32.totalorder 1, %s25
      %p337 = scmp.lt.s32.totalorder %s25, 3
      %p338 = pnand %p336, %p337
      %p339 = pneg %p338
      // Predicated region
      $region45: #{tpu_custom_call.1} parent=5 // pred_check
        _
      $region46: #{tpu_custom_call.1} parent=5 // pred_check_branch
        %341 = sbr.rel (%p338) target = $region48
      $region47: #{tpu_custom_call.1} parent=5 // pred_region
        %s342 = ssub.s32 %s25, 1
        %s343 = sand.u32 %s52, 1
        %s344 = scalar_lea.sflag [#allocation3], %s343
        %s345 = sand.u32 %s52, 1
        %s346 = smul.addr %s345, 64
        %s347 = scalar_lea.vmem [#allocation2], %s346
        // Predicated region
        $region49: #{tpu_custom_call.1} parent=47 // pred_check
          %p348 = pneg %p65
        $region50: #{tpu_custom_call.1} parent=47 // pred_check_branch
          %350 = sbr.rel (%p348) target = $region52
        $region51: #{tpu_custom_call.1} parent=47 // pred_region
          %352 = dma.done %s344, 1024
        $region52: #{tpu_custom_call.1} parent=47 // pred_fallthru
          _
        %s353 = sand.u32 %s52, 1
        %s354 = scalar_lea.sflag [#allocation3], %s353
        %s355 = sand.u32 %s52, 1
        %s356 = smul.addr %s355, 64
        %s357 = scalar_lea.vmem [#allocation2], %s356
        %p358 = pneg %p65
        %p359 = pneg %p62
        %p360 = pneg %p86
        %p361 = pneg %p83
        %p362 = pneg %p107
        %p363 = pneg %p104
        %p364 = pneg %p128
        %p365 = pneg %p125
        %p366 = pneg %p149
        %p367 = pneg %p146
        %p368 = pneg %p170
        %p369 = pneg %p167
        %p370 = pneg %p191
        %p371 = pneg %p188
        %p372 = pneg %p219
        %p373 = pneg %p216
        %s374 = sand.u32 %s206, 1
        %s375 = scalar_lea.sflag [#allocation4], %s374
        %s376 = sand.u32 %s206, 1
        %s377 = smul.addr %s376, 8
        %s378 = scalar_lea.vmem [#allocation5], %s377
        %p379 = pneg %p247
        %p380 = pneg %p244
        %s381 = sand.u32 %s30, 1
        %s382 = scalar_lea.sflag [#allocation7], %s381
        %s383 = sand.u32 %s234, 1
        %s384 = smul.addr %s383, 8
        %s385 = scalar_lea.vmem [#allocation6], %s384
        %p386 = pneg %p275
        %p387 = pneg %p272
        %s388 = sand.u32 %s30, 1
        %s389 = scalar_lea.sflag [#allocation7], %s388
        %s390 = sand.u32 %s262, 1
        %s391 = smul.addr %s390, 64
        %s392 = scalar_lea.vmem [#allocation8], %s391
        %s393 = smul.u32 8, %s35
        %s394 = smul.u32 8, %s35
        %s395 = smul.u32 8, %s35
        %s396 = smul.u32 8, %s35
        %v398 = vld [vmem:[%s347] sm:$0xff]
        %v399 = vld [vmem:[%s347 + $0x8] sm:$0xff]
        %v400 = vld [vmem:[%s347 + $0x10] sm:$0xff]
        %v401 = vld [vmem:[%s347 + $0x18] sm:$0xff]
        %v402 = vld [vmem:[%s347 + $0x20] sm:$0xff]
        %v403 = vld [vmem:[%s347 + $0x28] sm:$0xff]
        %v404 = vld [vmem:[%s347 + $0x30] sm:$0xff]
        %v405 = vld [vmem:[%s347 + $0x38] sm:$0xff]
        %v406 = vld [vmem:[%s1] sm:$0x1]
        %v407 = vld [vmem:[%s4] sm:$0x3]
        %409 = vset.pattern.permute.xlu0 0
        %410 = vperm.xlu0 %409, %v407
        %v411 = vpop.permute.xlu0 %410
        %v421 = vunpack.c.l.b16 %v398
        %v422 = vunpack.c.h.b16 %v398
        %v423 = vunpack.c.l.b16 %v399
        %v424 = vunpack.c.h.b16 %v399
        %v425 = vunpack.c.l.b16 %v400
        %v426 = vunpack.c.h.b16 %v400
        %v427 = vunpack.c.l.b16 %v401
        %v428 = vunpack.c.h.b16 %v401
        %v429 = vunpack.c.l.b16 %v402
        %v430 = vunpack.c.h.b16 %v402
        %v431 = vunpack.c.l.b16 %v403
        %v432 = vunpack.c.h.b16 %v403
        %v433 = vunpack.c.l.b16 %v404
        %v434 = vunpack.c.h.b16 %v404
        %v435 = vunpack.c.l.b16 %v405
        %v436 = vunpack.c.h.b16 %v405
        %v437 = vpack.c.b16 %v429, %v421
        %v438 = vpack.c.b16 %v430, %v422
        %v439 = vpack.c.b16 %v431, %v423
        %v440 = vpack.c.b16 %v432, %v424
        %v441 = vpack.c.b16 %v433, %v425
        %v442 = vpack.c.b16 %v434, %v426
        %v443 = vpack.c.b16 %v435, %v427
        %v444 = vpack.c.b16 %v436, %v428
        %vm453 = vcmask 130048
        %v455 = vsel %vm453, %v406, 0
        %457 = vmatpush.bf16.msra.mxu0 0
        %458 = vmatpush.bf16.msra.mxu0 0
        %459 = vmatpush.bf16.msra.mxu0 0
        %460 = vmatpush.bf16.msra.mxu0 0
        %461 = vmatpush.bf16.msra.mxu0 0
        %462 = vmatpush.bf16.msra.mxu0 0
        %463 = vmatpush.bf16.msra.mxu0 0
        %464 = vmatpush.bf16.msra.mxu0 %v437
        %465 = vmatmul.bf16.gmra.mxu0 %v455
        %v466 = vpop.f32.mrf.mxu0
        %v467 = vadd.f32 %v411, %v466
        %v468 = vpop.f32.mrf.mxu0
        %469 = vdwg.mxu0
        %470 = vmatpush.bf16.msra.mxu0 0
        %471 = vmatpush.bf16.msra.mxu0 0
        %472 = vmatpush.bf16.msra.mxu0 0
        %473 = vmatpush.bf16.msra.mxu0 0
        %474 = vmatpush.bf16.msra.mxu0 0
        %475 = vmatpush.bf16.msra.mxu0 0
        %476 = vmatpush.bf16.msra.mxu0 0
        %477 = vmatpush.bf16.msra.mxu0 %v438
        %478 = vmatmul.bf16.gmra.mxu0 %v455
        %v479 = vpop.f32.mrf.mxu0
        %v480 = vadd.f32 %v411, %v479
        %v481 = vpop.f32.mrf.mxu0
        %482 = vdwg.mxu0
        %483 = vmatpush.bf16.msra.mxu0 0
        %484 = vmatpush.bf16.msra.mxu0 0
        %485 = vmatpush.bf16.msra.mxu0 0
        %486 = vmatpush.bf16.msra.mxu0 0
        %487 = vmatpush.bf16.msra.mxu0 0
        %488 = vmatpush.bf16.msra.mxu0 0
        %489 = vmatpush.bf16.msra.mxu0 0
        %490 = vmatpush.bf16.msra.mxu0 %v439
        %491 = vmatmul.bf16.gmra.mxu0 %v455
        %v492 = vpop.f32.mrf.mxu0
        %v493 = vadd.f32 %v411, %v492
        %v494 = vpop.f32.mrf.mxu0
        %495 = vdwg.mxu0
        %496 = vmatpush.bf16.msra.mxu0 0
        %497 = vmatpush.bf16.msra.mxu0 0
        %498 = vmatpush.bf16.msra.mxu0 0
        %499 = vmatpush.bf16.msra.mxu0 0
        %500 = vmatpush.bf16.msra.mxu0 0
        %501 = vmatpush.bf16.msra.mxu0 0
        %502 = vmatpush.bf16.msra.mxu0 0
        %503 = vmatpush.bf16.msra.mxu0 %v440
        %504 = vmatmul.bf16.gmra.mxu0 %v455
        %v505 = vpop.f32.mrf.mxu0
        %v506 = vadd.f32 %v411, %v505
        %v507 = vpop.f32.mrf.mxu0
        %508 = vdwg.mxu0
        %509 = vmatpush.bf16.msra.mxu0 0
        %510 = vmatpush.bf16.msra.mxu0 0
        %511 = vmatpush.bf16.msra.mxu0 0
        %512 = vmatpush.bf16.msra.mxu0 0
        %513 = vmatpush.bf16.msra.mxu0 0
        %514 = vmatpush.bf16.msra.mxu0 0
        %515 = vmatpush.bf16.msra.mxu0 0
        %516 = vmatpush.bf16.msra.mxu0 %v441
        %517 = vmatmul.bf16.gmra.mxu0 %v455
        %v518 = vpop.f32.mrf.mxu0
        %v519 = vadd.f32 %v411, %v518
        %v520 = vpop.f32.mrf.mxu0
        %521 = vdwg.mxu0
        %522 = vmatpush.bf16.msra.mxu0 0
        %523 = vmatpush.bf16.msra.mxu0 0
        %524 = vmatpush.bf16.msra.mxu0 0
        %525 = vmatpush.bf16.msra.mxu0 0
        %526 = vmatpush.bf16.msra.mxu0 0
        %527 = vmatpush.bf16.msra.mxu0 0
        %528 = vmatpush.bf16.msra.mxu0 0
        %529 = vmatpush.bf16.msra.mxu0 %v442
        %530 = vmatmul.bf16.gmra.mxu0 %v455
        %v531 = vpop.f32.mrf.mxu0
        %v532 = vadd.f32 %v411, %v531
        %v533 = vpop.f32.mrf.mxu0
        %534 = vdwg.mxu0
        %535 = vmatpush.bf16.msra.mxu0 0
        %536 = vmatpush.bf16.msra.mxu0 0
        %537 = vmatpush.bf16.msra.mxu0 0
        %538 = vmatpush.bf16.msra.mxu0 0
        %539 = vmatpush.bf16.msra.mxu0 0
        %540 = vmatpush.bf16.msra.mxu0 0
        %541 = vmatpush.bf16.msra.mxu0 0
        %542 = vmatpush.bf16.msra.mxu0 %v443
        %543 = vmatmul.bf16.gmra.mxu0 %v455
        %v544 = vpop.f32.mrf.mxu0
        %v545 = vadd.f32 %v411, %v544
        %v546 = vpop.f32.mrf.mxu0
        %547 = vdwg.mxu0
        %548 = vmatpush.bf16.msra.mxu0 0
        %549 = vmatpush.bf16.msra.mxu0 0
        %550 = vmatpush.bf16.msra.mxu0 0
        %551 = vmatpush.bf16.msra.mxu0 0
        %552 = vmatpush.bf16.msra.mxu0 0
        %553 = vmatpush.bf16.msra.mxu0 0
        %554 = vmatpush.bf16.msra.mxu0 0
        %555 = vmatpush.bf16.msra.mxu0 %v444
        %556 = vmatmul.bf16.gmra.mxu0 %v455
        %v557 = vpop.f32.mrf.mxu0
        %v558 = vadd.f32 %v411, %v557
        %v559 = vpop.f32.mrf.mxu0
        %560 = vdwg.mxu0
        %v561 = vpack.c.bf16 %v480, %v467
        %v562 = vpack.c.bf16 %v506, %v493
        %v563 = vpack.c.bf16 %v532, %v519
        %v564 = vpack.c.bf16 %v558, %v545
        %v569 = vrot.slane %v561, 3
        %v570 = vrot.slane %v562, 6
        %v571 = vrot.slane %v562, 1
        %v572 = vrot.slane %v563, 4
        %v573 = vrot.slane %v563, 7
        %v574 = vrot.slane %v564, 2
        %v575 = vrot.slane %v564, 5
        %vm576 = vcmask 1040384
        %v579 = vsel %vm576, %v561, %v569
        %vm580 = vcmask 1042434
        %v583 = vsel %vm580, %v570, %v571
        %vm584 = vcmask 1041408
        %v585 = vsel %vm584, %v579, %v583
        %vm586 = vcmask 1044484
        %v589 = vsel %vm586, %v572, %v573
        %vm590 = vcmask 1046534
        %v593 = vsel %vm590, %v574, %v575
        %vm594 = vcmask 1045508
        %v595 = vsel %vm594, %v589, %v593
        %vm596 = vcmask 1043456
        %v597 = vsel %vm596, %v585, %v595
        %599 = vst [vmem:[%s378] sm:$0xff] %v597
        %v600 = vld [vmem:[%s2] sm:$0x1]
        %v601 = vld [vmem:[%s5] sm:$0x3]
        %603 = vset.pattern.permute.xlu0 0
        %604 = vperm.xlu0 %603, %v601
        %v605 = vpop.permute.xlu0 %604
        %v608 = vsel %vm453, %v600, 0
        %610 = vmatpush.bf16.msra.mxu0 0
        %611 = vmatpush.bf16.msra.mxu0 0
        %612 = vmatpush.bf16.msra.mxu0 0
        %613 = vmatpush.bf16.msra.mxu0 0
        %614 = vmatpush.bf16.msra.mxu0 0
        %615 = vmatpush.bf16.msra.mxu0 0
        %616 = vmatpush.bf16.msra.mxu0 0
        %617 = vmatpush.bf16.msra.mxu0 %v437
        %618 = vmatmul.bf16.gmra.mxu0 %v608
        %v619 = vpop.f32.mrf.mxu0
        %v620 = vadd.f32 %v605, %v619
        %v621 = vpop.f32.mrf.mxu0
        %622 = vdwg.mxu0
        %623 = vmatpush.bf16.msra.mxu0 0
        %624 = vmatpush.bf16.msra.mxu0 0
        %625 = vmatpush.bf16.msra.mxu0 0
        %626 = vmatpush.bf16.msra.mxu0 0
        %627 = vmatpush.bf16.msra.mxu0 0
        %628 = vmatpush.bf16.msra.mxu0 0
        %629 = vmatpush.bf16.msra.mxu0 0
        %630 = vmatpush.bf16.msra.mxu0 %v438
        %631 = vmatmul.bf16.gmra.mxu0 %v608
        %v632 = vpop.f32.mrf.mxu0
        %v633 = vadd.f32 %v605, %v632
        %v634 = vpop.f32.mrf.mxu0
        %635 = vdwg.mxu0
        %636 = vmatpush.bf16.msra.mxu0 0
        %637 = vmatpush.bf16.msra.mxu0 0
        %638 = vmatpush.bf16.msra.mxu0 0
        %639 = vmatpush.bf16.msra.mxu0 0
        %640 = vmatpush.bf16.msra.mxu0 0
        %641 = vmatpush.bf16.msra.mxu0 0
        %642 = vmatpush.bf16.msra.mxu0 0
        %643 = vmatpush.bf16.msra.mxu0 %v439
        %644 = vmatmul.bf16.gmra.mxu0 %v608
        %v645 = vpop.f32.mrf.mxu0
        %v646 = vadd.f32 %v605, %v645
        %v647 = vpop.f32.mrf.mxu0
        %648 = vdwg.mxu0
        %649 = vmatpush.bf16.msra.mxu0 0
        %650 = vmatpush.bf16.msra.mxu0 0
        %651 = vmatpush.bf16.msra.mxu0 0
        %652 = vmatpush.bf16.msra.mxu0 0
        %653 = vmatpush.bf16.msra.mxu0 0
        %654 = vmatpush.bf16.msra.mxu0 0
        %655 = vmatpush.bf16.msra.mxu0 0
        %656 = vmatpush.bf16.msra.mxu0 %v440
        %657 = vmatmul.bf16.gmra.mxu0 %v608
        %v658 = vpop.f32.mrf.mxu0
        %v659 = vadd.f32 %v605, %v658
        %v660 = vpop.f32.mrf.mxu0
        %661 = vdwg.mxu0
        %662 = vmatpush.bf16.msra.mxu0 0
        %663 = vmatpush.bf16.msra.mxu0 0
        %664 = vmatpush.bf16.msra.mxu0 0
        %665 = vmatpush.bf16.msra.mxu0 0
        %666 = vmatpush.bf16.msra.mxu0 0
        %667 = vmatpush.bf16.msra.mxu0 0
        %668 = vmatpush.bf16.msra.mxu0 0
        %669 = vmatpush.bf16.msra.mxu0 %v441
        %670 = vmatmul.bf16.gmra.mxu0 %v608
        %v671 = vpop.f32.mrf.mxu0
        %v672 = vadd.f32 %v605, %v671
        %v673 = vpop.f32.mrf.mxu0
        %674 = vdwg.mxu0
        %675 = vmatpush.bf16.msra.mxu0 0
        %676 = vmatpush.bf16.msra.mxu0 0
        %677 = vmatpush.bf16.msra.mxu0 0
        %678 = vmatpush.bf16.msra.mxu0 0
        %679 = vmatpush.bf16.msra.mxu0 0
        %680 = vmatpush.bf16.msra.mxu0 0
        %681 = vmatpush.bf16.msra.mxu0 0
        %682 = vmatpush.bf16.msra.mxu0 %v442
        %683 = vmatmul.bf16.gmra.mxu0 %v608
        %v684 = vpop.f32.mrf.mxu0
        %v685 = vadd.f32 %v605, %v684
        %v686 = vpop.f32.mrf.mxu0
        %687 = vdwg.mxu0
        %688 = vmatpush.bf16.msra.mxu0 0
        %689 = vmatpush.bf16.msra.mxu0 0
        %690 = vmatpush.bf16.msra.mxu0 0
        %691 = vmatpush.bf16.msra.mxu0 0
        %692 = vmatpush.bf16.msra.mxu0 0
        %693 = vmatpush.bf16.msra.mxu0 0
        %694 = vmatpush.bf16.msra.mxu0 0
        %695 = vmatpush.bf16.msra.mxu0 %v443
        %696 = vmatmul.bf16.gmra.mxu0 %v608
        %v697 = vpop.f32.mrf.mxu0
        %v698 = vadd.f32 %v605, %v697
        %v699 = vpop.f32.mrf.mxu0
        %700 = vdwg.mxu0
        %701 = vmatpush.bf16.msra.mxu0 0
        %702 = vmatpush.bf16.msra.mxu0 0
        %703 = vmatpush.bf16.msra.mxu0 0
        %704 = vmatpush.bf16.msra.mxu0 0
        %705 = vmatpush.bf16.msra.mxu0 0
        %706 = vmatpush.bf16.msra.mxu0 0
        %707 = vmatpush.bf16.msra.mxu0 0
        %708 = vmatpush.bf16.msra.mxu0 %v444
        %709 = vmatmul.bf16.gmra.mxu0 %v608
        %v710 = vpop.f32.mrf.mxu0
        %v711 = vadd.f32 %v605, %v710
        %v712 = vpop.f32.mrf.mxu0
        %713 = vdwg.mxu0
        %v714 = vpack.c.bf16 %v633, %v620
        %v715 = vpack.c.bf16 %v659, %v646
        %v716 = vpack.c.bf16 %v685, %v672
        %v717 = vpack.c.bf16 %v711, %v698
        %v722 = vrot.slane %v714, 3
        %v723 = vrot.slane %v715, 6
        %v724 = vrot.slane %v715, 1
        %v725 = vrot.slane %v716, 4
        %v726 = vrot.slane %v716, 7
        %v727 = vrot.slane %v717, 2
        %v728 = vrot.slane %v717, 5
        %v731 = vsel %vm576, %v714, %v722
        %v734 = vsel %vm580, %v723, %v724
        %v735 = vsel %vm584, %v731, %v734
        %v738 = vsel %vm586, %v725, %v726
        %v741 = vsel %vm590, %v727, %v728
        %v742 = vsel %vm594, %v738, %v741
        %v743 = vsel %vm596, %v735, %v742
        %745 = vst [vmem:[%s385] sm:$0xff] %v743
        %v746 = vld [vmem:[%s3] sm:$0xf]
        %v747 = vld [vmem:[%s3 + $0x4] sm:$0xf]
        %v748 = vld [vmem:[%s6] sm:$0xff]
        %v749 = vld [vmem:[%s6 + $0x8] sm:$0xff]
        %751 = vset.pattern.permute.xlu0 0
        %752 = vperm.xlu0 %751, %v748
        %v753 = vpop.permute.xlu0 %752
        %756 = vset.pattern.permute.xlu0 0
        %757 = vperm.xlu0 %756, %v749
        %v758 = vpop.permute.xlu0 %757
        %v762 = vunpack.c.l.b16 %v746
        %v763 = vunpack.c.l.b16 %v747
        %v764 = vpack.c.b16 %v763, %v762
        %v766 = vsel %vm453, %v764, 0
        %768 = vmatpush.bf16.msra.mxu0 0
        %769 = vmatpush.bf16.msra.mxu0 0
        %770 = vmatpush.bf16.msra.mxu0 0
        %771 = vmatpush.bf16.msra.mxu0 0
        %772 = vmatpush.bf16.msra.mxu0 0
        %773 = vmatpush.bf16.msra.mxu0 0
        %774 = vmatpush.bf16.msra.mxu0 0
        %775 = vmatpush.bf16.msra.mxu0 %v437
        %776 = vmatmul.bf16.gmra.mxu0 %v766
        %v777 = vpop.f32.mrf.mxu0
        %v778 = vadd.f32 %v753, %v777
        %v779 = vpop.f32.mrf.mxu0
        %v780 = vadd.f32 %v758, %v779
        %781 = vdwg.mxu0
        %782 = vmatpush.bf16.msra.mxu0 0
        %783 = vmatpush.bf16.msra.mxu0 0
        %784 = vmatpush.bf16.msra.mxu0 0
        %785 = vmatpush.bf16.msra.mxu0 0
        %786 = vmatpush.bf16.msra.mxu0 0
        %787 = vmatpush.bf16.msra.mxu0 0
        %788 = vmatpush.bf16.msra.mxu0 0
        %789 = vmatpush.bf16.msra.mxu0 %v438
        %790 = vmatmul.bf16.gmra.mxu0 %v766
        %v791 = vpop.f32.mrf.mxu0
        %v792 = vadd.f32 %v753, %v791
        %v793 = vpop.f32.mrf.mxu0
        %v794 = vadd.f32 %v758, %v793
        %795 = vdwg.mxu0
        %796 = vmatpush.bf16.msra.mxu0 0
        %797 = vmatpush.bf16.msra.mxu0 0
        %798 = vmatpush.bf16.msra.mxu0 0
        %799 = vmatpush.bf16.msra.mxu0 0
        %800 = vmatpush.bf16.msra.mxu0 0
        %801 = vmatpush.bf16.msra.mxu0 0
        %802 = vmatpush.bf16.msra.mxu0 0
        %803 = vmatpush.bf16.msra.mxu0 %v439
        %804 = vmatmul.bf16.gmra.mxu0 %v766
        %v805 = vpop.f32.mrf.mxu0
        %v806 = vadd.f32 %v753, %v805
        %v807 = vpop.f32.mrf.mxu0
        %v808 = vadd.f32 %v758, %v807
        %809 = vdwg.mxu0
        %810 = vmatpush.bf16.msra.mxu0 0
        %811 = vmatpush.bf16.msra.mxu0 0
        %812 = vmatpush.bf16.msra.mxu0 0
        %813 = vmatpush.bf16.msra.mxu0 0
        %814 = vmatpush.bf16.msra.mxu0 0
        %815 = vmatpush.bf16.msra.mxu0 0
        %816 = vmatpush.bf16.msra.mxu0 0
        %817 = vmatpush.bf16.msra.mxu0 %v440
        %818 = vmatmul.bf16.gmra.mxu0 %v766
        %v819 = vpop.f32.mrf.mxu0
        %v820 = vadd.f32 %v753, %v819
        %v821 = vpop.f32.mrf.mxu0
        %v822 = vadd.f32 %v758, %v821
        %823 = vdwg.mxu0
        %824 = vmatpush.bf16.msra.mxu0 0
        %825 = vmatpush.bf16.msra.mxu0 0
        %826 = vmatpush.bf16.msra.mxu0 0
        %827 = vmatpush.bf16.msra.mxu0 0
        %828 = vmatpush.bf16.msra.mxu0 0
        %829 = vmatpush.bf16.msra.mxu0 0
        %830 = vmatpush.bf16.msra.mxu0 0
        %831 = vmatpush.bf16.msra.mxu0 %v441
        %832 = vmatmul.bf16.gmra.mxu0 %v766
        %v833 = vpop.f32.mrf.mxu0
        %v834 = vadd.f32 %v753, %v833
        %v835 = vpop.f32.mrf.mxu0
        %v836 = vadd.f32 %v758, %v835
        %837 = vdwg.mxu0
        %838 = vmatpush.bf16.msra.mxu0 0
        %839 = vmatpush.bf16.msra.mxu0 0
        %840 = vmatpush.bf16.msra.mxu0 0
        %841 = vmatpush.bf16.msra.mxu0 0
        %842 = vmatpush.bf16.msra.mxu0 0
        %843 = vmatpush.bf16.msra.mxu0 0
        %844 = vmatpush.bf16.msra.mxu0 0
        %845 = vmatpush.bf16.msra.mxu0 %v442
        %846 = vmatmul.bf16.gmra.mxu0 %v766
        %v847 = vpop.f32.mrf.mxu0
        %v848 = vadd.f32 %v753, %v847
        %v849 = vpop.f32.mrf.mxu0
        %v850 = vadd.f32 %v758, %v849
        %851 = vdwg.mxu0
        %852 = vmatpush.bf16.msra.mxu0 0
        %853 = vmatpush.bf16.msra.mxu0 0
        %854 = vmatpush.bf16.msra.mxu0 0
        %855 = vmatpush.bf16.msra.mxu0 0
        %856 = vmatpush.bf16.msra.mxu0 0
        %857 = vmatpush.bf16.msra.mxu0 0
        %858 = vmatpush.bf16.msra.mxu0 0
        %859 = vmatpush.bf16.msra.mxu0 %v443
        %860 = vmatmul.bf16.gmra.mxu0 %v766
        %v861 = vpop.f32.mrf.mxu0
        %v862 = vadd.f32 %v753, %v861
        %v863 = vpop.f32.mrf.mxu0
        %v864 = vadd.f32 %v758, %v863
        %865 = vdwg.mxu0
        %866 = vmatpush.bf16.msra.mxu0 0
        %867 = vmatpush.bf16.msra.mxu0 0
        %868 = vmatpush.bf16.msra.mxu0 0
        %869 = vmatpush.bf16.msra.mxu0 0
        %870 = vmatpush.bf16.msra.mxu0 0
        %871 = vmatpush.bf16.msra.mxu0 0
        %872 = vmatpush.bf16.msra.mxu0 0
        %873 = vmatpush.bf16.msra.mxu0 %v444
        %874 = vmatmul.bf16.gmra.mxu0 %v766
        %v875 = vpop.f32.mrf.mxu0
        %v876 = vadd.f32 %v753, %v875
        %v877 = vpop.f32.mrf.mxu0
        %v878 = vadd.f32 %v758, %v877
        %879 = vdwg.mxu0
        %v880 = vpack.c.bf16 %v792, %v778
        %v881 = vpack.c.bf16 %v820, %v806
        %v882 = vpack.c.bf16 %v848, %v834
        %v883 = vpack.c.bf16 %v876, %v862
        %v884 = vpack.c.bf16 %v794, %v780
        %v885 = vpack.c.bf16 %v822, %v808
        %v886 = vpack.c.bf16 %v850, %v836
        %v887 = vpack.c.bf16 %v878, %v864
        %888 = vst [vmem:[%s392] sm:$0xff] %v880
        %889 = vst [vmem:[%s392 + $0x8] sm:$0xff] %v881
        %890 = vst [vmem:[%s392 + $0x10] sm:$0xff] %v882
        %891 = vst [vmem:[%s392 + $0x18] sm:$0xff] %v883
        %892 = vst [vmem:[%s392 + $0x20] sm:$0xff] %v884
        %893 = vst [vmem:[%s392 + $0x28] sm:$0xff] %v885
        %894 = vst [vmem:[%s392 + $0x30] sm:$0xff] %v886
        %895 = vst [vmem:[%s392 + $0x38] sm:$0xff] %v887
        %s896 = sand.u32 %s206, 1
        %s897 = scalar_lea.sflag [#allocation4], %s896
        %s898 = sand.u32 %s206, 1
        %s899 = smul.addr %s898, 8
        %s900 = scalar_lea.vmem [#allocation5], %s899
        %s901 = sand.u32 %s30, 1
        %s902 = scalar_lea.sflag [#allocation7], %s901
        %s903 = sand.u32 %s234, 1
        %s904 = smul.addr %s903, 8
        %s905 = scalar_lea.vmem [#allocation6], %s904
        %s906 = sand.u32 %s30, 1
        %s907 = scalar_lea.sflag [#allocation7], %s906
        %s908 = sand.u32 %s262, 1
        %s909 = smul.addr %s908, 64
        %s910 = scalar_lea.vmem [#allocation8], %s909
        // Predicated region
        $region53: #{tpu_custom_call.1} parent=47 // pred_check
          %p911 = pneg %p216
        $region54: #{tpu_custom_call.1} parent=47 // pred_check_branch
          %913 = sbr.rel (%p911) target = $region56
        $region55: #{tpu_custom_call.1} parent=47 // pred_region
          %s914 = smul.u32 8, %s35
          %916 = vsyncadd %s897, 0
          %s917 = smul.addr %s34, 8
          %s918 = sadd.s32 %s914, %s917
          %s919 = scalar_lea.hbm %s7, %s918
          %s921 = sshll.u32 %s900, 4
          %s922 = int_to_ptr.vmem [resolvable:$true] %s921
          %s923 = sshll.u32 %s919, 4
          %s924 = int_to_ptr.hbm [resolvable:$true] %s923
          %926 = dma.vmem_to_hbm [thread:$0]  %s922, 128, %s924, %s897
        $region56: #{tpu_custom_call.1} parent=47 // pred_fallthru
          _
        // Predicated region
        $region57: #{tpu_custom_call.1} parent=47 // pred_check
          %p927 = pneg %p244
        $region58: #{tpu_custom_call.1} parent=47 // pred_check_branch
          %929 = sbr.rel (%p927) target = $region60
        $region59: #{tpu_custom_call.1} parent=47 // pred_region
          %s930 = smul.u32 8, %s35
          %932 = vsyncadd %s902, 0
          %s933 = smul.addr %s34, 8
          %s934 = sadd.s32 %s930, %s933
          %s935 = scalar_lea.hbm %s8, %s934
          %s937 = sshll.u32 %s905, 4
          %s938 = int_to_ptr.vmem [resolvable:$true] %s937
          %s939 = sshll.u32 %s935, 4
          %s940 = int_to_ptr.hbm [resolvable:$true] %s939
          %942 = dma.vmem_to_hbm [thread:$0]  %s938, 128, %s940, %s902
        $region60: #{tpu_custom_call.1} parent=47 // pred_fallthru
          _
        // Predicated region
        $region61: #{tpu_custom_call.1} parent=47 // pred_check
          %p943 = pneg %p272
        $region62: #{tpu_custom_call.1} parent=47 // pred_check_branch
          %945 = sbr.rel (%p943) target = $region64
        $region63: #{tpu_custom_call.1} parent=47 // pred_region
          %s946 = smul.u32 8, %s35
          %948 = vsyncadd %s907, 0
          %s949 = smul.addr %s34, 16
          %s950 = sadd.s32 %s946, %s949
          %s951 = smul.addr %s950, 4
          %s952 = scalar_lea.hbm %s9, %s951
          %s953 = sshll.u32 %s910, 4
          %s954 = int_to_ptr.vmem [resolvable:$true] %s953
          %s955 = sshll.u32 %s952, 4
          %s956 = int_to_ptr.hbm [resolvable:$true] %s955
          %961 = dma.vmem_to_hbm [thread:$0]  %s954, 1024, %s956, %s907, 512, 512, 32
        $region64: #{tpu_custom_call.1} parent=47 // pred_fallthru
          _
      $region48: #{tpu_custom_call.1} parent=5 // pred_fallthru
        _
      %p962 = scmp.le.s32.totalorder 2, %s25
      // Predicated region
      $region65: #{tpu_custom_call.1} parent=5 // pred_check
        %p963 = pneg %p962
      $region66: #{tpu_custom_call.1} parent=5 // pred_check_branch
        %965 = sbr.rel (%p963) target = $region68
      $region67: #{tpu_custom_call.1} parent=5 // pred_region
        %s966 = ssub.s32 %s25, 2
        // Predicated region
        $region69: #{tpu_custom_call.1} parent=67 // pred_check
          %p967 = pneg %p222
        $region70: #{tpu_custom_call.1} parent=67 // pred_check_branch
          %969 = sbr.rel (%p967) target = $region72
        $region71: #{tpu_custom_call.1} parent=67 // pred_region
          %s970 = sand.u32 %s207, 1
          %s971 = scalar_lea.sflag [#allocation4], %s970
          %s972 = sand.u32 %s207, 1
          %s973 = smul.addr %s972, 8
          %s974 = scalar_lea.vmem [#allocation5], %s973
          %976 = dma.done %s971, 128
        $region72: #{tpu_custom_call.1} parent=67 // pred_fallthru
          _
        // Predicated region
        $region73: #{tpu_custom_call.1} parent=67 // pred_check
          %p977 = pneg %p250
        $region74: #{tpu_custom_call.1} parent=67 // pred_check_branch
          %979 = sbr.rel (%p977) target = $region76
        $region75: #{tpu_custom_call.1} parent=67 // pred_region
          %s980 = sand.u32 %s31, 1
          %s981 = scalar_lea.sflag [#allocation7], %s980
          %s982 = sand.u32 %s235, 1
          %s983 = smul.addr %s982, 8
          %s984 = scalar_lea.vmem [#allocation6], %s983
          %986 = dma.done %s981, 128
        $region76: #{tpu_custom_call.1} parent=67 // pred_fallthru
          _
        // Predicated region
        $region77: #{tpu_custom_call.1} parent=67 // pred_check
          %p987 = pneg %p278
        $region78: #{tpu_custom_call.1} parent=67 // pred_check_branch
          %989 = sbr.rel (%p987) target = $region80
        $region79: #{tpu_custom_call.1} parent=67 // pred_region
          %s990 = sand.u32 %s31, 1
          %s991 = scalar_lea.sflag [#allocation7], %s990
          %s992 = sand.u32 %s263, 1
          %s993 = smul.addr %s992, 64
          %s994 = scalar_lea.vmem [#allocation8], %s993
          %996 = dma.done %s991, 1024
        $region80: #{tpu_custom_call.1} parent=67 // pred_fallthru
          _
      $region68: #{tpu_custom_call.1} parent=5 // pred_fallthru
        _
    $region6: #{tpu_custom_call.1} parent=1 // loop_footer
      %s29 = sadd.s32 1, %s25
    $region7: #{tpu_custom_call.1} parent=1 // loop_footer_branch
      %24 = sbr.rel target = $region3
    $region8: #{tpu_custom_call.1} parent=1 // loop_exit
      _
    %997 = vsyncpa [#allocation3], 1
    %s998 = scalar_lea.sflag [#allocation3], 1
    %999 = vsyncpa %s998, 1
    %1000 = vsyncpa [#allocation4], 1
    %s1001 = scalar_lea.sflag [#allocation4], 1
    %1002 = vsyncpa %s1001, 1
    %1003 = vsyncpa [#allocation7], 1
    %s1004 = scalar_lea.sflag [#allocation7], 1
    %1005 = vsyncpa %s1004, 1

</llo_original>
